<compile_context>
chip_gen: v5e
topology: v5e:2x2
jax: 0.10.0
libtpu: 0.0.40
codegen_flags: <defaults>
</compile_context>

<pallas_src>
import functools
import math

import jax
import jax.numpy as jnp
from jax.experimental import pallas as pl
from jax.experimental.pallas import tpu as pltpu


def _round_up(x, m):
    return ((x + m - 1) // m) * m


def _maxout_kernel(x_ref, w_ref, b_ref, o_ref, *, out_feature, pool_size):
    # x_ref: (tm, K)        row tile (f32 or bf16 MXU operand)
    # w_ref: (K, pool*out)  pool-major columns, grid-invariant (single-buffered)
    # b_ref: (1, pool*out)  pool-major bias, f32
    # o_ref: (tm, out)
    y = jnp.dot(x_ref[...], w_ref[...], preferred_element_type=jnp.float32)
    y = y + b_ref[...].astype(jnp.float32)
    # Pool max over *contiguous* pool-major column slices (avoids the strided
    # reshape(tm, out, pool).max(-1)).  Note: for out_feature < 128 the pool
    # slices share a vreg, so the compiler may still emit lane shifts (XLU)
    # for this maximum tree -- the XLU slot is otherwise idle in this kernel,
    # so that is effectively free.  For production shapes prefer
    # out_feature % 128 == 0 so the slices are lane-aligned.
    res = y[:, 0:out_feature]
    for p in range(1, pool_size):
        res = jnp.maximum(res, y[:, p * out_feature:(p + 1) * out_feature])
    o_ref[...] = res.astype(o_ref.dtype)


def maxout_forward(x, weight, bias, *, out_feature, pool_size, tm=None,
                   mxu_dtype=jnp.bfloat16, x_bytes_per_step=2 * 1024 * 1024):
    """Maxout forward.

    x:      (..., in_feature)
    weight: (out_feature * pool_size, in_feature)   -- PyTorch nn.Linear layout
    bias:   (out_feature * pool_size,)
    Returns (prod(leading dims), out_feature), matching
    linear(x).view(-1, out_feature, pool_size).max(2)[0].

    mxu_dtype: dtype of the MXU operands (x and weight).  Defaults to bf16
      (supported on v5e/v6e/v7x); accumulation, bias add and the pool max are
      always f32.  Pass jnp.float32 (or None to keep input dtypes) for a
      bit-tight f32 path.
    """
    in_feature = x.shape[-1]
    op = out_feature * pool_size
    assert weight.shape == (op, in_feature)
    assert bias.shape == (op,)

    out_dtype = x.dtype
    x2d = x.reshape(-1, in_feature)
    n = x2d.shape[0]

    # The kernel is HBM-bandwidth bound on every TPU generation (arithmetic
    # intensity ~in_feature/2 flop/byte in f32, far below the ridge points),
    # so the MXU operands default to bf16 to halve the x / weight streams.
    if mxu_dtype is not None:
        x2d = x2d.astype(mxu_dtype)
    mxu_itemsize = jnp.dtype(x2d.dtype).itemsize
    # Sub-32-bit dtypes pack along sublanes: the (tm, K) MXU operand row tile
    # must be a multiple of 8 (f32), 16 (bf16) or 32 (int8/fp8).
    tile_align = max(8, 32 // mxu_itemsize)

    n_align = _round_up(n, tile_align)
    if tm is None:
        # Byte-budget-driven row tile: ~x_bytes_per_step of x per grid step
        # (fills MXU rows, amortizes the ~0.35us per-grid-step overhead)...
        tm = max(tile_align,
                 (x_bytes_per_step // (in_feature * mxu_itemsize))
                 // tile_align * tile_align)
        # ...never larger than the (rounded-up) batch...
        tm = min(tm, n_align)
        # ...and keep >= 2 grid steps whenever the batch allows it, so the
        # "parallel" row axis can shard across the 2 TensorCores of a v7x chip.
        if n_align >= 2 * tile_align:
            tm = min(tm, _round_up((n_align + 1) // 2, tile_align))
    else:
        # Clamp user-provided tm so tm > N cannot inflate the padded batch
        # (pure wasted FLOPs + HBM traffic on a mem-bound kernel).
        tm = min(tm, n_align)
    assert tm % tile_align == 0, (
        f"tm must be a multiple of {tile_align} for MXU dtype {x2d.dtype}")

    # General N: pad the row dim to a tile multiple, slice the result after.
    n_pad = _round_up(n, tm)
    if n_pad != n:
        x2d = jnp.pad(x2d, ((0, n_pad - n), (0, 0)))

    # Pre-pack the weight pool-major: new column p*out_feature + o holds the
    # original linear column o*pool_size + p (same permutation for the bias),
    # so the in-kernel pool max runs over contiguous column slices.
    w_pm = (
        weight.T.reshape(in_feature, out_feature, pool_size)
        .transpose(0, 2, 1)
        .reshape(in_feature, op)
    )
    b_pm = bias.reshape(out_feature, pool_size).T.reshape(1, op)
    b_pm = b_pm.astype(jnp.float32)
    if mxu_dtype is not None:
        w_pm = w_pm.astype(mxu_dtype)

    out_itemsize = jnp.dtype(out_dtype).itemsize

    # Per-step VMEM footprint: double-buffered x tile + single-buffered
    # (grid-invariant) weight and bias + double-buffered output tile.
    vmem_needed = (
        2 * tm * in_feature * mxu_itemsize
        + in_feature * op * mxu_itemsize
        + op * 4
        + 2 * tm * out_feature * out_itemsize
    )
    # Raise the scoped VMEM limit (default 16 MiB on v5e, 32 MiB on v6e/v7x)
    # but stay within v7x's 64 MiB physical VMEM per TensorCore.
    vmem_limit = int(min(64 * 1024 * 1024,
                         max(32 * 1024 * 1024, 2 * vmem_needed)))

    # TODO(synk): for production shapes where the resident (K, op) weight no
    # longer fits the per-generation VMEM budget (64 MiB physical on v7x), add
    # a K grid axis ("arbitrary", last) with an f32 accumulator scratch instead
    # of shrinking tm; on v7x, fp8 operands (f32 accumulate) are a further
    # byte-side option (no int8 MXU path there).
    # TODO(synk): out_feature=32 gives lane-sparse (masked) output stores; for
    # production either emit bf16 outputs or pack several row blocks into a
    # 128-lane-wide output slab in the wrapper.

    grid = (n_pad // tm,)

    cost = pl.CostEstimate(
        flops=2 * n_pad * in_feature * op,
        transcendentals=0,
        bytes_accessed=(
            n_pad * in_feature * mxu_itemsize          # x
            + in_feature * op * mxu_itemsize           # weight
            + op * 4                                   # bias
            + n_pad * out_feature * out_itemsize       # out
        ),
    )

    kernel = functools.partial(
        _maxout_kernel, out_feature=out_feature, pool_size=pool_size
    )

    out = pl.pallas_call(
        kernel,
        out_shape=jax.ShapeDtypeStruct((n_pad, out_feature), out_dtype),
        grid_spec=pltpu.PrefetchScalarGridSpec(
            num_scalar_prefetch=0,
            grid=grid,
            in_specs=[
                pl.BlockSpec((tm, in_feature), lambda i: (i, 0)),
                # Weight / bias are grid-invariant: single-buffer them so the
                # default double-buffering does not double their VMEM footprint.
                pl.BlockSpec((in_feature, op), lambda i: (0, 0),
                             pipeline_mode=pl.Buffered(1)),
                pl.BlockSpec((1, op), lambda i: (0, 0),
                             pipeline_mode=pl.Buffered(1)),
            ],
            out_specs=pl.BlockSpec((tm, out_feature), lambda i: (i, 0)),
        ),
        compiler_params=pltpu.CompilerParams(
            dimension_semantics=("parallel",),
            vmem_limit_bytes=vmem_limit,
        ),
        cost_estimate=cost,
    )(x2d, w_pm, b_pm)

    if n_pad != n:
        out = out[:n]
    return out


if __name__ == "__main__":
    # Shapes consistent with the module: in_feature=128, out_feature=32,
    # pool_size=4 (linear produces 128 columns).  N=50 deliberately not a tile
    # multiple, to exercise the pad/slice path.
    in_feature = 128
    out_feature = 32
    pool_size = 4
    N = 50

    key = jax.random.PRNGKey(0)
    kx, kw, kb = jax.random.split(key, 3)

    x = jax.random.normal(kx, (N, in_feature), dtype=jnp.float32)

    # nn.Linear-style init: U(-1/sqrt(in), 1/sqrt(in)); PyTorch weight layout.
    bound = 1.0 / math.sqrt(in_feature)
    weight = jax.random.uniform(
        kw, (out_feature * pool_size, in_feature),
        minval=-bound, maxval=bound, dtype=jnp.float32,
    )
    bias = jax.random.uniform(
        kb, (out_feature * pool_size,),
        minval=-bound, maxval=bound, dtype=jnp.float32,
    )

    # Pure-JAX reference of the PyTorch semantics.
    ref = (x @ weight.T + bias).reshape(-1, out_feature, pool_size).max(axis=-1)

    # 1) Default path: bf16 MXU operands, byte-budget tile, >=2-step parallel
    #    grid (v7x megacore).  Looser tolerance for bf16 operand rounding.
    out_bf16 = jax.block_until_ready(
        maxout_forward(x, weight, bias,
                       out_feature=out_feature, pool_size=pool_size))
    assert out_bf16.shape == (N, out_feature)
    assert out_bf16.dtype == x.dtype
    assert jnp.allclose(out_bf16, ref, atol=3e-2, rtol=3e-2), \
        "mismatch vs reference (bf16 MXU path)"

    # 2) Full-f32 MXU path with a small explicit tile (multi-step grid plus
    #    row-padding path); tight tolerance.
    out_f32 = jax.block_until_ready(
        maxout_forward(x, weight, bias,
                       out_feature=out_feature, pool_size=pool_size,
                       tm=16, mxu_dtype=jnp.float32))
    assert out_f32.shape == (N, out_feature)
    assert jnp.allclose(out_f32, ref, atol=1e-5, rtol=1e-5), \
        "mismatch vs reference (f32 MXU path)"

    # 3) Oversized user tm is clamped to the batch (no inflated padding).
    out_clamp = jax.block_until_ready(
        maxout_forward(x, weight, bias,
                       out_feature=out_feature, pool_size=pool_size,
                       tm=512, mxu_dtype=jnp.float32))
    assert out_clamp.shape == (N, out_feature)
    assert jnp.allclose(out_clamp, ref, atol=1e-5, rtol=1e-5), \
        "mismatch vs reference (clamped-tm path)"

    print("KERNEL_OK")
</pallas_src>

<mosaic_0001>
module attributes {stable_mosaic.version = 11 : i64} {
  func.func @_maxout_kernel(%arg0: i32, %arg1: memref<32x128xbf16, #tpu.memory_space<vmem>>, %arg2: memref<128x128xbf16, #tpu.memory_space<vmem>>, %arg3: memref<1x128xf32, #tpu.memory_space<vmem>>, %arg4: memref<32x32xf32, #tpu.memory_space<vmem>>) attributes {dimension_semantics = [#tpu.dimension_semantics<parallel>], iteration_bounds = array<i64: 2>, scalar_prefetch = 0 : i64, scratch_operands = 0 : i64, tpu.core_type = #tpu.core_type<tc>, window_params = [{transform_indices = @transform_0, window_bounds = array<i64: 32, 128>}, {pipeline_mode = #tpu.pipeline_mode<synchronous>, transform_indices = @transform_1, window_bounds = array<i64: 128, 128>}, {pipeline_mode = #tpu.pipeline_mode<synchronous>, transform_indices = @transform_2, window_bounds = array<i64: 1, 128>}, {transform_indices = @transform_3, window_bounds = array<i64: 32, 32>}]} {
    %c0 = arith.constant 0 : index
    %c0_0 = arith.constant 0 : index
    %0 = vector.load %arg1[%c0, %c0_0] : memref<32x128xbf16, #tpu.memory_space<vmem>>, vector<32x128xbf16>
    %c0_1 = arith.constant 0 : index
    %c0_2 = arith.constant 0 : index
    %1 = vector.load %arg2[%c0_1, %c0_2] : memref<128x128xbf16, #tpu.memory_space<vmem>>, vector<128x128xbf16>
    %cst = arith.constant dense<0.000000e+00> : vector<32x128xf32>
    %2 = tpu.matmul %0, %1, %cst {dimension_numbers = #tpu.dot_dimension_numbers<[1], [0], [0], [1], [0, 0, 1, 1], [], []>} : vector<32x128xbf16>, vector<128x128xbf16>, vector<32x128xf32> -> vector<32x128xf32>
    %c0_3 = arith.constant 0 : index
    %c0_4 = arith.constant 0 : index
    %3 = vector.load %arg3[%c0_3, %c0_4] : memref<1x128xf32, #tpu.memory_space<vmem>>, vector<1x128xf32>
    %4 = vector.broadcast %3 : vector<1x128xf32> to vector<32x128xf32>
    %5 = arith.addf %2, %4 : vector<32x128xf32>
    %6 = vector.extract_strided_slice %5 {offsets = [0, 0], sizes = [32, 32], strides = [1, 1]} : vector<32x128xf32> to vector<32x32xf32>
    %7 = vector.extract_strided_slice %5 {offsets = [0, 32], sizes = [32, 32], strides = [1, 1]} : vector<32x128xf32> to vector<32x32xf32>
    %8 = arith.maximumf %6, %7 : vector<32x32xf32>
    %9 = vector.extract_strided_slice %5 {offsets = [0, 64], sizes = [32, 32], strides = [1, 1]} : vector<32x128xf32> to vector<32x32xf32>
    %10 = arith.maximumf %8, %9 : vector<32x32xf32>
    %11 = vector.extract_strided_slice %5 {offsets = [0, 96], sizes = [32, 32], strides = [1, 1]} : vector<32x128xf32> to vector<32x32xf32>
    %12 = arith.maximumf %10, %11 : vector<32x32xf32>
    %c0_5 = arith.constant 0 : index
    %c0_6 = arith.constant 0 : index
    %13 = vector.load %arg4[%c0_5, %c0_6] : memref<32x32xf32, #tpu.memory_space<vmem>>, vector<32x32xf32>
    tpu.vector_store %arg4[%c0_5, %c0_6], %12 {strides = array<i32>} : memref<32x32xf32, #tpu.memory_space<vmem>>, vector<32x32xf32>,
    return
  }
  func.func @transform_0(%arg0: i32) -> (i32, i32) {
    %c0_i32 = arith.constant 0 : i32
    %c0_i32_0 = arith.constant 0 : i32
    return %arg0, %c0_i32 : i32, i32
  }
  func.func @transform_1(%arg0: i32) -> (i32, i32) {
    %c0_i32 = arith.constant 0 : i32
    %c0_i32_0 = arith.constant 0 : i32
    %c0_i32_1 = arith.constant 0 : i32
    return %c0_i32, %c0_i32_0 : i32, i32
  }
  func.func @transform_2(%arg0: i32) -> (i32, i32) {
    %c0_i32 = arith.constant 0 : i32
    %c0_i32_0 = arith.constant 0 : i32
    %c0_i32_1 = arith.constant 0 : i32
    return %c0_i32, %c0_i32_0 : i32, i32
  }
  func.func @transform_3(%arg0: i32) -> (i32, i32) {
    %c0_i32 = arith.constant 0 : i32
    %c0_i32_0 = arith.constant 0 : i32
    return %arg0, %c0_i32 : i32, i32
  }
}

</mosaic_0001>

<llo_original>
// kernel: tpu_custom_call.1
$region0: #{tpu_custom_call.1}
  #allocation0 [shape = 'u32[]', space=smem, size = 0x4, offset = 0x4, fixed_abs, tag = 'smem constant byte address 0x4 - core index']
  #allocation1 [shape = 'u32[72,128]{1,0:T(1,128)}', space=vmem, size = 0x9000, scoped, tag = 'internal scratch']
  %s0 = inlined_call_operand.hbm [shape: bf16[64,128], index: 0, kind: input, shape index: {}]
  %s1 = inlined_call_operand.hbm [shape: bf16[128,128], index: 1, kind: input, shape index: {}]
  %s2 = inlined_call_operand.vmem [shape: f32[1,128], index: 2, kind: input, shape index: {}]
  %s3 = inlined_call_operand.vmem [shape: f32[64,32], index: 3, kind: output, shape index: {}]
  %s4 = sld [smem:[#allocation0]]
  $region53: #{tpu_custom_call.1} parent=0
    _
  %s6 = ssub.s32 1, %s4
  %s7 = scalar_select 0, %s6, %s4
  $region1: #{tpu_custom_call.1} parent=0
    #allocation2 [shape = 'u8[16384]{0}', space=vmem, size = 0x4000, scoped, tag = 'input window, operand 0']
    #allocation3 [shape = 's32[2]{0}', space=sflag, size = 0x8, scoped, tag = 'scoped memory for tpu_custom_call.1']
    #allocation4 [shape = 'u8[32768]{0}', space=vmem, size = 0x8000, scoped, tag = 'input window, operand 1, single buffered']
    #allocation5 [shape = 's32[1]{0}', space=sflag, size = 0x4, scoped, tag = 'scoped memory for tpu_custom_call.1']
    %8 = vsyncpa [#allocation3], 0
    %s9 = scalar_lea.sflag [#allocation3], 1
    %10 = vsyncpa %s9, 0
    %11 = vsyncpa [#allocation5], 0
    loop: start=0, step=1, limit=4
    $region2: #{tpu_custom_call.1} parent=1 // loop_pre_header
      _
    $region3: #{tpu_custom_call.1} parent=1 // loop_header
      %s13 = sphi 0, %s17
      %p14 = scmp.ge.s32.totalorder %s13, 4
      %s23 = sphi 0, %s25
      %s26 = sphi 0, %s23
      %s27 = sphi 0, %s26
      %s43 = sphi 0, %s27
      %s47 = sphi 0, %s47
      %s49 = sphi 0, %s47
      %s50 = sphi 0, %s49
      %s64 = sphi 0, %s50
      %s68 = sphi 0, %s68
      %s70 = sphi 0, %s68
      %s71 = sphi 0, %s70
      %s85 = sphi 0, %s71
      %s91 = sphi 0, %s93
      %s94 = sphi 0, %s91
      %s95 = sphi 0, %s94
      %s111 = sphi 0, %s95
    $region4: #{tpu_custom_call.1} parent=1 // loop_header_branch
      %16 = sbr.rel (%p14) target = $region8
    $region5: #{tpu_custom_call.1} parent=1 // loop_body
      %s18 = ssub.s32 %s13, 1
      %s19 = ssub.s32 %s13, 2
      %s20 = sadd.s32 %s13, 1
      %s21 = ssub.s32 %s13, %s20
      %p22 = scmp.eq.s32.totalorder %s21, 0
      %s24 = sadd.s32 %s23, 1
      %s25 = scalar_select %p22, %s23, %s24
      %p28 = pneg %p22
      %p29 = scmp.eq.s32.totalorder %s13, 1
      %p30 = por %p28, %p29
      %p31 = scmp.ne.s32.totalorder %s23, %s26
      %p32 = scmp.eq.s32.totalorder %s13, 0
      %p33 = por %p31, %p32
      %p34 = scmp.ne.s32.totalorder %s23, %s26
      %p35 = scmp.eq.s32.totalorder %s18, 1
      %p36 = por %p34, %p35
      %p37 = scmp.ne.s32.totalorder %s26, %s27
      %p38 = scmp.eq.s32.totalorder %s18, 0
      %p39 = por %p37, %p38
      %p40 = scmp.ne.s32.totalorder %s26, %s27
      %p41 = scmp.eq.s32.totalorder %s19, 1
      %p42 = por %p40, %p41
      %p44 = scmp.ne.s32.totalorder %s27, %s43
      %p45 = scmp.eq.s32.totalorder %s19, 0
      %p46 = por %p44, %p45
      %s48 = sadd.s32 %s47, 1
      %p51 = scmp.eq.s32.totalorder %s13, 1
      %p52 = scmp.ne.s32.totalorder %s47, %s49
      %p53 = scmp.eq.s32.totalorder %s13, 0
      %p54 = por %p52, %p53
      %p55 = scmp.ne.s32.totalorder %s47, %s49
      %p56 = scmp.eq.s32.totalorder %s18, 1
      %p57 = por %p55, %p56
      %p58 = scmp.ne.s32.totalorder %s49, %s50
      %p59 = scmp.eq.s32.totalorder %s18, 0
      %p60 = por %p58, %p59
      %p61 = scmp.ne.s32.totalorder %s49, %s50
      %p62 = scmp.eq.s32.totalorder %s19, 1
      %p63 = por %p61, %p62
      %p65 = scmp.ne.s32.totalorder %s50, %s64
      %p66 = scmp.eq.s32.totalorder %s19, 0
      %p67 = por %p65, %p66
      %s69 = sadd.s32 %s68, 1
      %p72 = scmp.eq.s32.totalorder %s13, 1
      %p73 = scmp.ne.s32.totalorder %s68, %s70
      %p74 = scmp.eq.s32.totalorder %s13, 0
      %p75 = por %p73, %p74
      %p76 = scmp.ne.s32.totalorder %s68, %s70
      %p77 = scmp.eq.s32.totalorder %s18, 1
      %p78 = por %p76, %p77
      %p79 = scmp.ne.s32.totalorder %s70, %s71
      %p80 = scmp.eq.s32.totalorder %s18, 0
      %p81 = por %p79, %p80
      %p82 = scmp.ne.s32.totalorder %s70, %s71
      %p83 = scmp.eq.s32.totalorder %s19, 1
      %p84 = por %p82, %p83
      %p86 = scmp.ne.s32.totalorder %s71, %s85
      %p87 = scmp.eq.s32.totalorder %s19, 0
      %p88 = por %p86, %p87
      %s89 = ssub.s32 %s13, %s20
      %p90 = scmp.eq.s32.totalorder %s89, 0
      %s92 = sadd.s32 %s91, 1
      %s93 = scalar_select %p90, %s91, %s92
      %p96 = pneg %p90
      %p97 = scmp.eq.s32.totalorder %s13, 1
      %p98 = por %p96, %p97
      %p99 = scmp.ne.s32.totalorder %s91, %s94
      %p100 = scmp.eq.s32.totalorder %s13, 0
      %p101 = por %p99, %p100
      %p102 = scmp.ne.s32.totalorder %s91, %s94
      %p103 = scmp.eq.s32.totalorder %s18, 1
      %p104 = por %p102, %p103
      %p105 = scmp.ne.s32.totalorder %s94, %s95
      %p106 = scmp.eq.s32.totalorder %s18, 0
      %p107 = por %p105, %p106
      %p108 = scmp.ne.s32.totalorder %s94, %s95
      %p109 = scmp.eq.s32.totalorder %s19, 1
      %p110 = por %p108, %p109
      %p112 = scmp.ne.s32.totalorder %s95, %s111
      %p113 = scmp.eq.s32.totalorder %s19, 0
      %p114 = por %p112, %p113
      %p115 = scmp.le.s32.totalorder 1, %s13
      %p116 = scmp.lt.s32.totalorder %s13, 3
      %p117 = pnand %p115, %p116
      %p118 = pneg %p117
      // Predicated region
      $region9: #{tpu_custom_call.1} parent=5 // pred_check
        _
      $region10: #{tpu_custom_call.1} parent=5 // pred_check_branch
        %120 = sbr.rel (%p117) target = $region12
      $region11: #{tpu_custom_call.1} parent=5 // pred_region
        %s121 = ssub.s32 %s13, 1
        // Predicated region
        $region13: #{tpu_custom_call.1} parent=11 // pred_check
          %p122 = pneg %p60
        $region14: #{tpu_custom_call.1} parent=11 // pred_check_branch
          %124 = sbr.rel (%p122) target = $region16
        $region15: #{tpu_custom_call.1} parent=11 // pred_region
          %126 = vsyncadd [#allocation5], 0
          %s127 = sshll.u32 %s1, 4
          %s128 = int_to_ptr.hbm [resolvable:$true] %s127
          %s129 = sshll.u32 [#allocation4], 4
          %s130 = int_to_ptr.vmem [resolvable:$true] %s129
          %135 = dma.hbm_to_vmem [thread:$0]  %s128, 1024, %s130, [#allocation5], 64, 64, 4
        $region16: #{tpu_custom_call.1} parent=11 // pred_fallthru
          _
        // Predicated region
        $region17: #{tpu_custom_call.1} parent=11 // pred_check
          %p136 = pneg %p81
        $region18: #{tpu_custom_call.1} parent=11 // pred_check_branch
          %138 = sbr.rel (%p136) target = $region20
        $region19: #{tpu_custom_call.1} parent=11 // pred_region
          _
        $region20: #{tpu_custom_call.1} parent=11 // pred_fallthru
          _
      $region12: #{tpu_custom_call.1} parent=5 // pred_fallthru
        _
      %p139 = scmp.lt.s32.totalorder %s13, 2
      // Predicated region
      $region21: #{tpu_custom_call.1} parent=5 // pred_check
        %p140 = pneg %p139
      $region22: #{tpu_custom_call.1} parent=5 // pred_check_branch
        %142 = sbr.rel (%p140) target = $region24
      $region23: #{tpu_custom_call.1} parent=5 // pred_region
        // Predicated region
        $region25: #{tpu_custom_call.1} parent=23 // pred_check
          %p143 = pneg %p33
        $region26: #{tpu_custom_call.1} parent=23 // pred_check_branch
          %145 = sbr.rel (%p143) target = $region28
        $region27: #{tpu_custom_call.1} parent=23 // pred_region
          %s146 = sand.u32 %s23, 1
          %s147 = scalar_lea.sflag [#allocation3], %s146
          %s148 = sand.u32 %s23, 1
          %s149 = smul.addr %s148, 16
          %s150 = scalar_lea.vmem [#allocation2], %s149
          %s151 = smul.u32 4, %s13
          %153 = vsyncadd %s147, 0
          %s154 = smul.addr %s151, 4
          %s155 = scalar_lea.hbm %s0, %s154
          %s156 = sshll.u32 %s155, 4
          %s157 = int_to_ptr.hbm [resolvable:$true] %s156
          %s158 = sshll.u32 %s150, 4
          %s159 = int_to_ptr.vmem [resolvable:$true] %s158
          %164 = dma.hbm_to_vmem [thread:$0]  %s157, 256, %s159, %s147, 64, 64, 4
        $region28: #{tpu_custom_call.1} parent=23 // pred_fallthru
          _
      $region24: #{tpu_custom_call.1} parent=5 // pred_fallthru
        _
      %p165 = scmp.le.s32.totalorder 1, %s13
      %p166 = scmp.lt.s32.totalorder %s13, 3
      %p167 = pnand %p165, %p166
      %p168 = pneg %p167
      // Predicated region
      $region29: #{tpu_custom_call.1} parent=5 // pred_check
        _
      $region30: #{tpu_custom_call.1} parent=5 // pred_check_branch
        %170 = sbr.rel (%p167) target = $region32
      $region31: #{tpu_custom_call.1} parent=5 // pred_region
        %s171 = ssub.s32 %s13, 1
        %s172 = sand.u32 %s26, 1
        %s173 = scalar_lea.sflag [#allocation3], %s172
        %s174 = sand.u32 %s26, 1
        %s175 = smul.addr %s174, 16
        %s176 = scalar_lea.vmem [#allocation2], %s175
        // Predicated region
        $region33: #{tpu_custom_call.1} parent=31 // pred_check
          %p177 = pneg %p39
        $region34: #{tpu_custom_call.1} parent=31 // pred_check_branch
          %179 = sbr.rel (%p177) target = $region36
        $region35: #{tpu_custom_call.1} parent=31 // pred_region
          %181 = dma.done %s173, 256
        $region36: #{tpu_custom_call.1} parent=31 // pred_fallthru
          _
        // Predicated region
        $region37: #{tpu_custom_call.1} parent=31 // pred_check
          %p182 = pneg %p60
        $region38: #{tpu_custom_call.1} parent=31 // pred_check_branch
          %184 = sbr.rel (%p182) target = $region40
        $region39: #{tpu_custom_call.1} parent=31 // pred_region
          %186 = dma.done [#allocation5], 1024
        $region40: #{tpu_custom_call.1} parent=31 // pred_fallthru
          _
        %s187 = sand.u32 %s26, 1
        %s188 = scalar_lea.sflag [#allocation3], %s187
        %s189 = sand.u32 %s26, 1
        %s190 = smul.addr %s189, 16
        %s191 = scalar_lea.vmem [#allocation2], %s190
        %p192 = pneg %p39
        %p193 = pneg %p36
        %p194 = pneg %p60
        %p195 = pneg %p57
        %p196 = pneg %p81
        %p197 = pneg %p78
        %p198 = pneg %p107
        %p199 = pneg %p104
        %s200 = smul.u32 4, %s18
        %p201 = scmp.lt.s32.totalorder %s200, 7
        %s202 = scalar_select %p201, %s200, 7
        %s203 = smul.addr %s202, 8
        %s204 = scalar_lea.vmem %s3, %s203
        %s205 = smul.u32 4, %s18
        %s206 = smul.u32 4, %s18
        %p207 = scmp.lt.s32.totalorder %s206, 7
        %s208 = scalar_select %p207, %s206, 7
        %s209 = smul.addr %s208, 8
        %s210 = scalar_lea.vmem %s3, %s209
        %s211 = smul.u32 4, %s18
        %v212 = vld [vmem:[%s176] sm:$0xf]
        %v213 = vld [vmem:[%s176 + $0x4] sm:$0xf]
        %v214 = vld [vmem:[%s176 + $0x8] sm:$0xf]
        %v215 = vld [vmem:[%s176 + $0xc] sm:$0xf]
        %v216 = vld [vmem:[#allocation4] sm:$0xf]
        %v217 = vld [vmem:[#allocation4 + $0x4] sm:$0xf]
        %v218 = vld [vmem:[#allocation4 + $0x8] sm:$0xf]
        %v219 = vld [vmem:[#allocation4 + $0xc] sm:$0xf]
        %v220 = vld [vmem:[#allocation4 + $0x10] sm:$0xf]
        %v221 = vld [vmem:[#allocation4 + $0x14] sm:$0xf]
        %v222 = vld [vmem:[#allocation4 + $0x18] sm:$0xf]
        %v223 = vld [vmem:[#allocation4 + $0x1c] sm:$0xf]
        %v224 = vld [vmem:[#allocation4 + $0x20] sm:$0xf]
        %v225 = vld [vmem:[#allocation4 + $0x24] sm:$0xf]
        %v226 = vld [vmem:[#allocation4 + $0x28] sm:$0xf]
        %v227 = vld [vmem:[#allocation4 + $0x2c] sm:$0xf]
        %v228 = vld [vmem:[#allocation4 + $0x30] sm:$0xf]
        %v229 = vld [vmem:[#allocation4 + $0x34] sm:$0xf]
        %v230 = vld [vmem:[#allocation4 + $0x38] sm:$0xf]
        %v231 = vld [vmem:[#allocation4 + $0x3c] sm:$0xf]
        %v232 = vld [vmem:[%s2] sm:$0x1]
        %v234 = vperm.slane %v232, 0
        %v240 = vunpack.c.l.b16 %v212
        %v241 = vunpack.c.l.b16 %v213
        %v242 = vunpack.c.l.b16 %v214
        %v243 = vunpack.c.l.b16 %v215
        %v244 = vpack.c.b16 %v241, %v240
        %v245 = vpack.c.b16 %v243, %v242
        %v264 = vunpack.c.l.b16 %v216
        %v265 = vunpack.c.l.b16 %v217
        %v266 = vunpack.c.l.b16 %v218
        %v267 = vunpack.c.l.b16 %v219
        %v268 = vunpack.c.l.b16 %v220
        %v269 = vunpack.c.l.b16 %v221
        %v270 = vunpack.c.l.b16 %v222
        %v271 = vunpack.c.l.b16 %v223
        %v272 = vunpack.c.l.b16 %v224
        %v273 = vunpack.c.l.b16 %v225
        %v274 = vunpack.c.l.b16 %v226
        %v275 = vunpack.c.l.b16 %v227
        %v276 = vunpack.c.l.b16 %v228
        %v277 = vunpack.c.l.b16 %v229
        %v278 = vunpack.c.l.b16 %v230
        %v279 = vunpack.c.l.b16 %v231
        %v280 = vpack.c.b16 %v265, %v264
        %v281 = vpack.c.b16 %v267, %v266
        %v282 = vpack.c.b16 %v269, %v268
        %v283 = vpack.c.b16 %v271, %v270
        %v284 = vpack.c.b16 %v273, %v272
        %v285 = vpack.c.b16 %v275, %v274
        %v286 = vpack.c.b16 %v277, %v276
        %v287 = vpack.c.b16 %v279, %v278
        %296 = vmatpush.bf16.msra.mxu0 %v287
        %297 = vmatpush.bf16.msra.mxu0 %v286
        %298 = vmatpush.bf16.msra.mxu0 %v285
        %299 = vmatpush.bf16.msra.mxu0 %v284
        %300 = vmatpush.bf16.msra.mxu0 %v283
        %301 = vmatpush.bf16.msra.mxu0 %v282
        %302 = vmatpush.bf16.msra.mxu0 %v281
        %303 = vmatpush.bf16.msra.mxu0 %v280
        %304 = vmatmul.bf16.gmra.mxu0 %v244
        %v305 = vpop.f32.mrf.mxu0
        %v306 = vadd.f32 %v234, %v305
        %v307 = vpop.f32.mrf.mxu0
        %v308 = vadd.f32 %v234, %v307
        %309 = vmatmul.bf16.gmra.mxu0 %v245
        %v310 = vpop.f32.mrf.mxu0
        %v311 = vadd.f32 %v234, %v310
        %v312 = vpop.f32.mrf.mxu0
        %v313 = vadd.f32 %v234, %v312
        %314 = vdwg.mxu0
        %319 = vrot.lane.b32.xlu0 %v306, 96
        %v320 = vpop.permute.xlu0 %319
        %321 = vrot.lane.b32.xlu0 %v308, 96
        %v322 = vpop.permute.xlu0 %321
        %323 = vrot.lane.b32.xlu0 %v311, 96
        %v324 = vpop.permute.xlu0 %323
        %325 = vrot.lane.b32.xlu0 %v313, 96
        %v326 = vpop.permute.xlu0 %325
        %v331 = vmax.f32 %v306, %v320
        %v332 = vmax.f32 %v308, %v322
        %v333 = vmax.f32 %v311, %v324
        %v334 = vmax.f32 %v313, %v326
        %335 = vrot.lane.b32.xlu0 %v306, 64
        %v336 = vpop.permute.xlu0 %335
        %337 = vrot.lane.b32.xlu0 %v308, 64
        %v338 = vpop.permute.xlu0 %337
        %339 = vrot.lane.b32.xlu0 %v311, 64
        %v340 = vpop.permute.xlu0 %339
        %341 = vrot.lane.b32.xlu0 %v313, 64
        %v342 = vpop.permute.xlu0 %341
        %v347 = vmax.f32 %v331, %v336
        %v348 = vmax.f32 %v332, %v338
        %v349 = vmax.f32 %v333, %v340
        %v350 = vmax.f32 %v334, %v342
        %351 = vrot.lane.b32.xlu0 %v306, 32
        %v352 = vpop.permute.xlu0 %351
        %353 = vrot.lane.b32.xlu0 %v308, 32
        %v354 = vpop.permute.xlu0 %353
        %355 = vrot.lane.b32.xlu0 %v311, 32
        %v356 = vpop.permute.xlu0 %355
        %357 = vrot.lane.b32.xlu0 %v313, 32
        %v358 = vpop.permute.xlu0 %357
        %v363 = vmax.f32 %v347, %v352
        %v364 = vmax.f32 %v348, %v354
        %v365 = vmax.f32 %v349, %v356
        %v366 = vmax.f32 %v350, %v358
        %vm367 = vcmask 261120
        %368 = vst.msk [vmem:[%s210] sm:$0xff] %vm367, %v363
        %369 = vst.msk [vmem:[%s210 + $0x8] sm:$0xff] %vm367, %v364
        %370 = vst.msk [vmem:[%s210 + $0x10] sm:$0xff] %vm367, %v365
        %371 = vst.msk [vmem:[%s210 + $0x18] sm:$0xff] %vm367, %v366
        %s372 = smul.u32 4, %s18
        %p373 = scmp.lt.s32.totalorder %s372, 7
        %s374 = scalar_select %p373, %s372, 7
        %s375 = smul.addr %s374, 8
        %s376 = scalar_lea.vmem %s3, %s375
        // Predicated region
        $region41: #{tpu_custom_call.1} parent=31 // pred_check
          %p377 = pneg %p104
        $region42: #{tpu_custom_call.1} parent=31 // pred_check_branch
          %379 = sbr.rel (%p377) target = $region44
        $region43: #{tpu_custom_call.1} parent=31 // pred_region
          %s380 = smul.u32 4, %s18
        $region44: #{tpu_custom_call.1} parent=31 // pred_fallthru
          _
      $region32: #{tpu_custom_call.1} parent=5 // pred_fallthru
        _
      %p381 = scmp.le.s32.totalorder 2, %s13
      // Predicated region
      $region45: #{tpu_custom_call.1} parent=5 // pred_check
        %p382 = pneg %p381
      $region46: #{tpu_custom_call.1} parent=5 // pred_check_branch
        %384 = sbr.rel (%p382) target = $region48
      $region47: #{tpu_custom_call.1} parent=5 // pred_region
        %s385 = ssub.s32 %s13, 2
        // Predicated region
        $region49: #{tpu_custom_call.1} parent=47 // pred_check
          %p386 = pneg %p110
        $region50: #{tpu_custom_call.1} parent=47 // pred_check_branch
          %388 = sbr.rel (%p386) target = $region52
        $region51: #{tpu_custom_call.1} parent=47 // pred_region
          %s389 = smul.u32 4, %s19
          %p390 = scmp.lt.s32.totalorder %s389, 7
          %s391 = scalar_select %p390, %s389, 7
          %s392 = smul.addr %s391, 8
          %s393 = scalar_lea.vmem %s3, %s392
        $region52: #{tpu_custom_call.1} parent=47 // pred_fallthru
          _
      $region48: #{tpu_custom_call.1} parent=5 // pred_fallthru
        _
    $region6: #{tpu_custom_call.1} parent=1 // loop_footer
      %s17 = sadd.s32 1, %s13
    $region7: #{tpu_custom_call.1} parent=1 // loop_footer_branch
      %12 = sbr.rel target = $region3
    $region8: #{tpu_custom_call.1} parent=1 // loop_exit
      _
    %394 = vsyncpa [#allocation3], 1
    %s395 = scalar_lea.sflag [#allocation3], 1
    %396 = vsyncpa %s395, 1
    %397 = vsyncpa [#allocation5], 1

</llo_original>
